<compile_context>
chip_gen: v5e
topology: v5e:2x2
jax: 0.10.0
libtpu: 0.0.40
codegen_flags: <defaults>
</compile_context>

<pallas_src>
import jax
import jax.numpy as jnp
from jax.experimental import pallas as pl
from jax.experimental.pallas import tpu as pltpu

_LANE_CANDIDATES = (1024, 512, 256, 128)
_TARGET_BLOCK_BYTES = 8 << 20      # ~8 MiB per block (amortizes ~0.35 us/step on v7x)
_SPLIT_THRESHOLD_BYTES = 4 << 20   # above this, force >= 2 grid steps (dual-TC v7x)
_VMEM_LIMIT_BYTES = 48 << 20       # 2 bufs x (in + out) x 8 MiB = 32 MiB, + headroom


def _hswish_kernel(x_ref, o_ref):
    # Compute in f32 regardless of input dtype (VPU slack is huge; DMA-bound).
    x = x_ref[...].astype(jnp.float32)
    y = x * jnp.clip(x + 3.0, 0.0, 6.0) * (1.0 / 6.0)
    o_ref[...] = y.astype(o_ref.dtype)


def _row_align(itemsize: int) -> int:
    # Sublane tile height: f32 -> 8, bf16/f16 -> 16, int8/fp8 -> 32.
    return max(8, 32 // max(1, itemsize))


def _pick_lane(n: int) -> int:
    """Largest lane width dividing n (rows may be ragged; blocks mask them)."""
    for lane in _LANE_CANDIDATES:
        if n % lane == 0:
            return lane
    return 0


def _block_rows(rows: int, lane: int, itemsize: int) -> int:
    align = _row_align(itemsize)
    if rows <= align:
        return rows                                   # single full-extent block
    row_bytes = lane * itemsize
    target = max(align, (_TARGET_BLOCK_BYTES // row_bytes) // align * align)
    steps = pl.cdiv(rows, target)
    if rows * row_bytes > _SPLIT_THRESHOLD_BYTES:
        # Make sure large arrays split into >= 2 (even) steps so the parallel
        # grid axis can be sharded across both TensorCores on v7x.
        steps = max(steps, 2)
        if steps % 2 == 1 and rows > steps * align:
            steps += 1
    br = pl.cdiv(pl.cdiv(rows, steps), align) * align  # round up to sublane tile
    return max(align, min(br, (rows // align) * align))


def _hswish_2d(x2d: jax.Array) -> jax.Array:
    """Run the kernel over a lane-dense (rows, lane) slab; lane % 128 == 0."""
    rows, lane = x2d.shape
    itemsize = x2d.dtype.itemsize
    br = _block_rows(rows, lane, itemsize)
    grid = (pl.cdiv(rows, br),)

    nbytes = x2d.size * itemsize
    cost = pl.CostEstimate(flops=5 * x2d.size, transcendentals=0,
                           bytes_accessed=2 * nbytes)

    return pl.pallas_call(
        _hswish_kernel,
        out_shape=jax.ShapeDtypeStruct((rows, lane), x2d.dtype),
        grid_spec=pltpu.PrefetchScalarGridSpec(
            num_scalar_prefetch=0,
            grid=grid,
            in_specs=[pl.BlockSpec((br, lane), lambda i: (i, 0))],
            out_specs=pl.BlockSpec((br, lane), lambda i: (i, 0)),
        ),
        compiler_params=pltpu.CompilerParams(
            dimension_semantics=("parallel",),
            vmem_limit_bytes=_VMEM_LIMIT_BYTES,
        ),
        cost_estimate=cost,
    )(x2d)


def hswish(x: jax.Array) -> jax.Array:
    """Elementwise Hswish over an array of any shape (NCHW in the PyTorch spec)."""
    orig_shape = x.shape
    n = x.size
    if n == 0:
        return x
    x_flat = x.reshape(-1)

    lane = _pick_lane(n)
    if lane:
        # Fast path: single pallas_call, zero extra HBM passes.  The final row
        # block may be ragged (pl.cdiv grid); elementwise + masked stores make
        # that benign.
        return _hswish_2d(x_flat.reshape(n // lane, lane)).reshape(orig_shape)

    # Rare path: element count not a multiple of 128.  Pad once to the next
    # multiple of 128 and slice back — still a single kernel pass, no
    # bulk + tail + concatenate round trip.
    n_pad = pl.cdiv(n, 128) * 128
    xp = jnp.pad(x_flat, (0, n_pad - n)).reshape(n_pad // 128, 128)
    return _hswish_2d(xp).reshape(-1)[:n].reshape(orig_shape)


def _hswish_ref(x):
    return x * jnp.clip(x + 3.0, 0.0, 6.0) / 6.0


if __name__ == "__main__":
    key = jax.random.PRNGKey(0)
    # NCHW input, matching the PyTorch module's expected conv-style tensor.
    x = jax.random.normal(key, (2, 4, 16, 16), dtype=jnp.float32) * 4.0

    y = jax.block_until_ready(hswish(x))
    assert y.shape == x.shape and y.dtype == x.dtype
    assert jnp.allclose(y, _hswish_ref(x), atol=1e-5, rtol=1e-5)

    # Secondary sanity checks: ragged row count (n % 128 == 0, rows % 8 != 0)
    # and a size that is not a multiple of 128 (padded path).
    k1, k2 = jax.random.split(key)
    x_ragged = jax.random.normal(k1, (23, 128), dtype=jnp.float32) * 4.0
    y_ragged = jax.block_until_ready(hswish(x_ragged))
    assert jnp.allclose(y_ragged, _hswish_ref(x_ragged), atol=1e-5, rtol=1e-5)

    x_odd = jax.random.normal(k2, (3, 5, 7, 11), dtype=jnp.float32) * 4.0
    y_odd = jax.block_until_ready(hswish(x_odd))
    assert jnp.allclose(y_odd, _hswish_ref(x_odd), atol=1e-5, rtol=1e-5)

    print("KERNEL_OK")
</pallas_src>

<mosaic_0001>
module attributes {stable_mosaic.version = 11 : i64} {
  func.func @_hswish_kernel(%arg0: i32, %arg1: memref<2x1024xf32, #tpu.memory_space<vmem>>, %arg2: memref<2x1024xf32, #tpu.memory_space<vmem>>) attributes {dimension_semantics = [#tpu.dimension_semantics<parallel>], iteration_bounds = array<i64: 1>, scalar_prefetch = 0 : i64, scratch_operands = 0 : i64, tpu.core_type = #tpu.core_type<tc>, window_params = [{transform_indices = @transform_0, window_bounds = array<i64: 2, 1024>}, {transform_indices = @transform_1, window_bounds = array<i64: 2, 1024>}]} {
    %c0 = arith.constant 0 : index
    %c0_0 = arith.constant 0 : index
    %0 = vector.load %arg1[%c0, %c0_0] : memref<2x1024xf32, #tpu.memory_space<vmem>>, vector<2x1024xf32>
    %cst = arith.constant 3.000000e+00 : f32
    %1 = vector.broadcast %cst : f32 to vector<2x1024xf32>
    %2 = arith.addf %0, %1 : vector<2x1024xf32>
    %cst_1 = arith.constant 0.000000e+00 : f32
    %cst_2 = arith.constant 6.000000e+00 : f32
    %3 = vector.broadcast %cst_1 : f32 to vector<2x1024xf32>
    %4 = arith.maximumf %3, %2 : vector<2x1024xf32>
    %5 = vector.broadcast %cst_2 : f32 to vector<2x1024xf32>
    %6 = arith.minimumf %5, %4 : vector<2x1024xf32>
    %7 = arith.mulf %0, %6 : vector<2x1024xf32>
    %cst_3 = arith.constant 0.166666672 : f32
    %8 = vector.broadcast %cst_3 : f32 to vector<2x1024xf32>
    %9 = arith.mulf %7, %8 : vector<2x1024xf32>
    %c0_4 = arith.constant 0 : index
    %c0_5 = arith.constant 0 : index
    %10 = vector.load %arg2[%c0_4, %c0_5] : memref<2x1024xf32, #tpu.memory_space<vmem>>, vector<2x1024xf32>
    tpu.vector_store %arg2[%c0_4, %c0_5], %9 {strides = array<i32>} : memref<2x1024xf32, #tpu.memory_space<vmem>>, vector<2x1024xf32>,
    return
  }
  func.func @transform_0(%arg0: i32) -> (i32, i32) {
    %c0_i32 = arith.constant 0 : i32
    %c0_i32_0 = arith.constant 0 : i32
    return %arg0, %c0_i32 : i32, i32
  }
  func.func @transform_1(%arg0: i32) -> (i32, i32) {
    %c0_i32 = arith.constant 0 : i32
    %c0_i32_0 = arith.constant 0 : i32
    return %arg0, %c0_i32 : i32, i32
  }
}

</mosaic_0001>

<llo_original>
// kernel: tpu_custom_call.1
$region0: #{tpu_custom_call.1}
  #allocation0 [shape = 'u32[]', space=smem, size = 0x4, offset = 0x4, fixed_abs, tag = 'smem constant byte address 0x4 - core index']
  #allocation1 [shape = 'u32[72,128]{1,0:T(1,128)}', space=vmem, size = 0x9000, scoped, tag = 'internal scratch']
  %s0 = inlined_call_operand.hbm [shape: f32[2,1024], index: 0, kind: input, shape index: {}]
  %s1 = inlined_call_operand.hbm [shape: f32[2,1024], index: 1, kind: output, shape index: {}]
  %s2 = sld [smem:[#allocation0]]
  $region18: #{tpu_custom_call.1} parent=0
    _
  %s4 = ssub.s32 1, %s2
  %s5 = scalar_select 0, %s4, %s2
  $region1: #{tpu_custom_call.1} parent=0
    #allocation2 [shape = 'u8[8192]{0}', space=vmem, size = 0x2000, scoped, tag = 'input window, operand 0, single buffered']
    #allocation3 [shape = 's32[1]{0}', space=sflag, size = 0x4, scoped, tag = 'scoped memory for tpu_custom_call.1']
    #allocation4 [shape = 's32[1]{0}', space=sflag, size = 0x4, scoped, tag = 'scoped memory for tpu_custom_call.1']
    #allocation5 [shape = 'u8[8192]{0}', space=vmem, size = 0x2000, scoped, tag = 'output window, operand 0, single buffered']
    %6 = vsyncpa [#allocation3], 0
    %7 = vsyncpa [#allocation4], 0
    // Predicated region
    $region2: #{tpu_custom_call.1} parent=1 // pred_check
      _
    $region3: #{tpu_custom_call.1} parent=1 // pred_check_branch
      %9 = sbr.rel (0) target = $region5
    $region4: #{tpu_custom_call.1} parent=1 // pred_region
      %11 = vsyncadd [#allocation3], 0
      %s13 = sshll.u32 %s0, 4
      %s14 = int_to_ptr.hbm [resolvable:$true] %s13
      %s15 = sshll.u32 [#allocation2], 4
      %s16 = int_to_ptr.vmem [resolvable:$true] %s15
      %18 = dma.hbm_to_vmem [thread:$0]  %s14, 256, %s16, [#allocation3]
    $region5: #{tpu_custom_call.1} parent=1 // pred_fallthru
      _
    // Predicated region
    $region6: #{tpu_custom_call.1} parent=1 // pred_check
      _
    $region7: #{tpu_custom_call.1} parent=1 // pred_check_branch
      %20 = sbr.rel (0) target = $region9
    $region8: #{tpu_custom_call.1} parent=1 // pred_region
      %22 = dma.done [#allocation3], 256
    $region9: #{tpu_custom_call.1} parent=1 // pred_fallthru
      _
    %v23 = vld [vmem:[#allocation2] sm:$0xff]
    %v24 = vld [vmem:[#allocation2 + $0x8] sm:$0xff]
    %v25 = vadd.f32 %v23, 3.0
    %v26 = vadd.f32 %v24, 3.0
    %v27 = vmax.f32 %v25, 0.0
    %v28 = vmax.f32 %v26, 0.0
    %v29 = vmin.f32 %v27, 6.0
    %v30 = vmin.f32 %v28, 6.0
    %v31 = vmul.f32 %v23, %v29
    %v32 = vmul.f32 %v24, %v30
    %v33 = vmul.f32 %v31, 0.16666667
    %v34 = vmul.f32 %v32, 0.16666667
    %35 = vst [vmem:[#allocation5] sm:$0xff] %v33
    %36 = vst [vmem:[#allocation5 + $0x8] sm:$0xff] %v34
    // Predicated region
    $region10: #{tpu_custom_call.1} parent=1 // pred_check
      _
    $region11: #{tpu_custom_call.1} parent=1 // pred_check_branch
      %38 = sbr.rel (0) target = $region13
    $region12: #{tpu_custom_call.1} parent=1 // pred_region
      %40 = vsyncadd [#allocation4], 0
      %s42 = sshll.u32 [#allocation5], 4
      %s43 = int_to_ptr.vmem [resolvable:$true] %s42
      %s44 = sshll.u32 %s1, 4
      %s45 = int_to_ptr.hbm [resolvable:$true] %s44
      %47 = dma.vmem_to_hbm [thread:$0]  %s43, 256, %s45, [#allocation4]
    $region13: #{tpu_custom_call.1} parent=1 // pred_fallthru
      _
    // Predicated region
    $region14: #{tpu_custom_call.1} parent=1 // pred_check
      _
    $region15: #{tpu_custom_call.1} parent=1 // pred_check_branch
      %49 = sbr.rel (0) target = $region17
    $region16: #{tpu_custom_call.1} parent=1 // pred_region
      %51 = dma.done [#allocation4], 256
    $region17: #{tpu_custom_call.1} parent=1 // pred_fallthru
      _
    %52 = vsyncpa [#allocation3], 1
    %53 = vsyncpa [#allocation4], 1

</llo_original>
